<compile_context>
chip_gen: v5e
topology: v5e:2x2
jax: 0.10.0
libtpu: 0.0.40
codegen_flags: <defaults>
</compile_context>

<pallas_src>
import functools

import jax
import jax.numpy as jnp
from jax.experimental import pallas as pl
from jax.experimental.pallas import tpu as pltpu


def _round_up(x, m):
    return (x + m - 1) // m * m


def build_combined_table(tables, emb_size, c_cont):
    """Build the fused gather table ONCE at module init (not per forward).

    Rows [0, c_cont)                      : identity block -> passes x through
                                            to output cols [K*emb, K*emb+c_cont)
    Rows [c_cont+off_k, c_cont+off_k+n_k) : embedding table k -> output cols
                                            [k*emb, (k+1)*emb)
    Returns (combined_table, offsets) with offsets already shifted by c_cont.
    """
    nvec = tuple(int(t.shape[0]) for t in tables)
    K = len(nvec)
    assert K >= 1 and c_cont >= 1
    emb_total = K * emb_size
    out_dim = emb_total + c_cont
    n_used = c_cont + sum(nvec)
    n_pad = _round_up(n_used, 128)          # MXU-friendly contraction width
    out_cols = _round_up(out_dim, 128)      # MXU-friendly output width

    # TODO(synk): for very large MultiDiscrete specs (sum(nvec) in the
    # thousands) add a contraction-axis grid dimension with a pl.when-init
    # accumulator (or a DMA row-gather) instead of keeping the whole table
    # VMEM-resident — relevant for v7x's 64 MiB VMEM.
    combined = jnp.zeros((n_pad, out_cols), jnp.float32)
    combined = combined.at[:c_cont, emb_total:out_dim].set(
        jnp.eye(c_cont, dtype=jnp.float32))
    offsets = []
    off = c_cont
    for k, t in enumerate(tables):
        combined = combined.at[off:off + nvec[k],
                               k * emb_size:(k + 1) * emb_size].set(
                                   t.astype(jnp.float32))
        offsets.append(off)
        off += nvec[k]
    return combined, tuple(offsets)


def _fused_input_kernel(offsets, values_ref, x_ref, table_ref, out_ref):
    """One fused one-hot + identity matmul: out = [emb_0|...|emb_{K-1}|x].

    values_ref : (TB, K)        int32   discrete indices for this batch tile
    x_ref      : (TB, c_cont)   f32     continuous features for this batch tile
    table_ref  : (N_pad, C_pad) f32     fused table (identity rows + tables)
    out_ref    : (TB, out_dim)  f32     out_dim = K*emb + c_cont (full last dim)
    """
    vals = values_ref[...]                          # (TB, K) int32
    xb = x_ref[...].astype(jnp.float32)             # (TB, c_cont)
    tb, c_cont = xb.shape
    n_pad = table_ref.shape[0]
    out_dim = out_ref.shape[1]

    # One hoisted lane iota, reused for all K comparisons (pure VPU work).
    lane = jax.lax.broadcasted_iota(jnp.int32, (tb, n_pad), 1)

    # Multi-hot over disjoint lane ranges; offsets already include +c_cont,
    # so lanes [0, c_cont) never match and stay free for the x splice.
    hot = None
    for k, off in enumerate(offsets):
        m = lane == (vals[:, k:k + 1] + off)
        hot = m if hot is None else jnp.logical_or(hot, m)

    # Splice x into contraction lanes [0, c_cont); everything else is the
    # one-hot (1.0) or 0.0.  Supports are disjoint for in-range indices.
    x_wide = jnp.concatenate(
        [xb, jnp.zeros((tb, n_pad - c_cont), jnp.float32)], axis=1)
    lhs = jnp.where(hot, jnp.float32(1.0), x_wide)

    # Single MXU push; exact in f32 (each output element has exactly one
    # nonzero addend: 1.0*table_row or 1.0*x).
    # TODO(synk): cast lhs/table to bf16 on v6e/v7x (hi/lo split if near-f32
    # embeddings are required) to avoid the f32 multi-pass MXU tax once this
    # op stops being HBM/overhead bound.
    res = jnp.dot(lhs, table_ref[...], preferred_element_type=jnp.float32)

    # Single store of the exact output width (block last dim == array last dim)
    # — no wrapper-side narrowing pass needed.
    out_ref[...] = res[:, :out_dim]


def input_module_forward(x, values, combined, offsets, emb_size, *,
                         block_b=2048):
    """Pallas equivalent of InputModule.forward(x, values)."""
    K = len(offsets)
    B, c_cont = x.shape
    assert values.shape == (B, K), (
        f"Number of discrete values ({values.shape[1]}) does not match "
        f"what was expected ({K})")
    out_dim = K * emb_size + c_cont
    n_pad, out_cols = combined.shape
    assert out_cols >= out_dim

    # Batch tiling: big tiles amortize per-step overhead; grid handles the
    # ragged last block (no wrapper pad / slice).
    tb = min(block_b, _round_up(B, 8))
    # v7x megacore: make sure both TensorCores get >= 1 step when B is large.
    if B >= 512 and pl.cdiv(B, tb) < 2:
        tb = _round_up(pl.cdiv(B, 2), 8)
    grid = pl.cdiv(B, tb)

    kernel = functools.partial(_fused_input_kernel, offsets)

    return pl.pallas_call(
        kernel,
        out_shape=jax.ShapeDtypeStruct((B, out_dim), jnp.float32),
        grid_spec=pltpu.PrefetchScalarGridSpec(
            num_scalar_prefetch=0,
            grid=(grid,),
            in_specs=[
                pl.BlockSpec((tb, K), lambda i: (i, 0)),        # discrete ids
                pl.BlockSpec((tb, c_cont), lambda i: (i, 0)),   # continuous x
                # Constant-index table stays VMEM-resident; double-buffering it
                # costs only ~64 KiB at 128x128 so pipeline_mode is left alone.
                pl.BlockSpec((n_pad, out_cols), lambda i: (0, 0)),
            ],
            out_specs=pl.BlockSpec((tb, out_dim), lambda i: (i, 0)),
        ),
        compiler_params=pltpu.CompilerParams(
            dimension_semantics=("parallel",)),   # megacore sharding on v7x
    )(values, x, combined)


def reference_forward(x, values, tables):
    parts = [jnp.take(t, values[:, ix], axis=0) for ix, t in enumerate(tables)]
    parts.append(x)
    return jnp.concatenate(parts, axis=1)


if __name__ == "__main__":
    nvec = (6, 4, 11)
    emb_size = 10
    cont_dim = 7

    key = jax.random.PRNGKey(0)
    k_x, k_v, *k_tabs = jax.random.split(key, 2 + len(nvec))

    tables = tuple(
        jax.random.normal(k, (n, emb_size), dtype=jnp.float32)
        for k, n in zip(k_tabs, nvec)
    )

    # Built once at "module init", hoisted out of the forward path.
    combined, offsets = build_combined_table(tables, emb_size, cont_dim)

    # Case 1: tiny batch (single grid step).
    B = 8
    x = jax.random.normal(k_x, (B, cont_dim), dtype=jnp.float32)
    values = jax.random.randint(
        k_v, (B, len(nvec)), 0, jnp.array(nvec, dtype=jnp.int32)
    ).astype(jnp.int32)

    out = jax.block_until_ready(
        input_module_forward(x, values, combined, offsets, emb_size))
    ref = reference_forward(x, values, tables)
    assert out.shape == (B, emb_size * len(nvec) + cont_dim)
    assert jnp.allclose(out, ref, atol=1e-5), "mismatch vs reference (B=8)"

    # Case 2: exercises the batch grid + ragged last block (grid > 1).
    B2 = 300
    x2 = jax.random.normal(k_x, (B2, cont_dim), dtype=jnp.float32)
    values2 = jax.random.randint(
        k_v, (B2, len(nvec)), 0, jnp.array(nvec, dtype=jnp.int32)
    ).astype(jnp.int32)

    out2 = jax.block_until_ready(
        input_module_forward(x2, values2, combined, offsets, emb_size,
                             block_b=128))
    ref2 = reference_forward(x2, values2, tables)
    assert out2.shape == (B2, emb_size * len(nvec) + cont_dim)
    assert jnp.allclose(out2, ref2, atol=1e-5), "mismatch vs reference (B=300)"

    print("KERNEL_OK")
</pallas_src>

<mosaic_0001>
module attributes {stable_mosaic.version = 11 : i64} {
  func.func @_fused_input_kernel(%arg0: i32, %arg1: memref<8x3xi32, #tpu.memory_space<vmem>>, %arg2: memref<8x7xf32, #tpu.memory_space<vmem>>, %arg3: memref<128x128xf32, #tpu.memory_space<vmem>>, %arg4: memref<8x37xf32, #tpu.memory_space<vmem>>) attributes {dimension_semantics = [#tpu.dimension_semantics<parallel>], iteration_bounds = array<i64: 1>, scalar_prefetch = 0 : i64, scratch_operands = 0 : i64, tpu.core_type = #tpu.core_type<tc>, window_params = [{transform_indices = @transform_0, window_bounds = array<i64: 8, 3>}, {transform_indices = @transform_1, window_bounds = array<i64: 8, 7>}, {pipeline_mode = #tpu.pipeline_mode<synchronous>, transform_indices = @transform_2, window_bounds = array<i64: 128, 128>}, {transform_indices = @transform_3, window_bounds = array<i64: 8, 37>}]} {
    %c0 = arith.constant 0 : index
    %c0_0 = arith.constant 0 : index
    %0 = vector.load %arg1[%c0, %c0_0] : memref<8x3xi32, #tpu.memory_space<vmem>>, vector<8x3xi32>
    %c0_1 = arith.constant 0 : index
    %c0_2 = arith.constant 0 : index
    %1 = vector.load %arg2[%c0_1, %c0_2] : memref<8x7xf32, #tpu.memory_space<vmem>>, vector<8x7xf32>
    %2 = tpu.iota {dimensions = array<i32: 1>} : vector<8x128xi32>
    %3 = vector.extract_strided_slice %0 {offsets = [0, 0], sizes = [8, 1], strides = [1, 1]} : vector<8x3xi32> to vector<8x1xi32>
    %c7_i32 = arith.constant 7 : i32
    %4 = vector.broadcast %c7_i32 : i32 to vector<8x1xi32>
    %5 = arith.addi %3, %4 : vector<8x1xi32>
    %6 = vector.broadcast %5 : vector<8x1xi32> to vector<8x128xi32>
    %7 = arith.cmpi eq, %2, %6 : vector<8x128xi32>
    %8 = vector.extract_strided_slice %0 {offsets = [0, 1], sizes = [8, 1], strides = [1, 1]} : vector<8x3xi32> to vector<8x1xi32>
    %c13_i32 = arith.constant 13 : i32
    %9 = vector.broadcast %c13_i32 : i32 to vector<8x1xi32>
    %10 = arith.addi %8, %9 : vector<8x1xi32>
    %11 = vector.broadcast %10 : vector<8x1xi32> to vector<8x128xi32>
    %12 = arith.cmpi eq, %2, %11 : vector<8x128xi32>
    %13 = arith.ori %7, %12 : vector<8x128xi1>
    %14 = vector.extract_strided_slice %0 {offsets = [0, 2], sizes = [8, 1], strides = [1, 1]} : vector<8x3xi32> to vector<8x1xi32>
    %c17_i32 = arith.constant 17 : i32
    %15 = vector.broadcast %c17_i32 : i32 to vector<8x1xi32>
    %16 = arith.addi %14, %15 : vector<8x1xi32>
    %17 = vector.broadcast %16 : vector<8x1xi32> to vector<8x128xi32>
    %18 = arith.cmpi eq, %2, %17 : vector<8x128xi32>
    %19 = arith.ori %13, %18 : vector<8x128xi1>
    %cst = arith.constant 0.000000e+00 : f32
    %20 = vector.broadcast %cst : f32 to vector<8x121xf32>
    %21 = tpu.concatenate %1, %20 in 1 : vector<8x7xf32>, vector<8x121xf32> -> vector<8x128xf32>
    %cst_3 = arith.constant 1.000000e+00 : f32
    %22 = vector.broadcast %cst_3 : f32 to vector<8x128xf32>
    %23 = arith.select %19, %22, %21 : vector<8x128xi1>, vector<8x128xf32>
    %c0_4 = arith.constant 0 : index
    %c0_5 = arith.constant 0 : index
    %24 = vector.load %arg3[%c0_4, %c0_5] : memref<128x128xf32, #tpu.memory_space<vmem>>, vector<128x128xf32>
    %cst_6 = arith.constant dense<0.000000e+00> : vector<8x128xf32>
    %25 = tpu.matmul %23, %24, %cst_6 {dimension_numbers = #tpu.dot_dimension_numbers<[1], [0], [0], [1], [0, 0, 1, 1], [], []>} : vector<8x128xf32>, vector<128x128xf32>, vector<8x128xf32> -> vector<8x128xf32>
    %26 = vector.extract_strided_slice %25 {offsets = [0, 0], sizes = [8, 37], strides = [1, 1]} : vector<8x128xf32> to vector<8x37xf32>
    %c0_7 = arith.constant 0 : index
    %c0_8 = arith.constant 0 : index
    %27 = vector.load %arg4[%c0_7, %c0_8] : memref<8x37xf32, #tpu.memory_space<vmem>>, vector<8x37xf32>
    tpu.vector_store %arg4[%c0_7, %c0_8], %26 {strides = array<i32>} : memref<8x37xf32, #tpu.memory_space<vmem>>, vector<8x37xf32>,
    return
  }
  func.func @transform_0(%arg0: i32) -> (i32, i32) {
    %c0_i32 = arith.constant 0 : i32
    %c0_i32_0 = arith.constant 0 : i32
    return %arg0, %c0_i32 : i32, i32
  }
  func.func @transform_1(%arg0: i32) -> (i32, i32) {
    %c0_i32 = arith.constant 0 : i32
    %c0_i32_0 = arith.constant 0 : i32
    return %arg0, %c0_i32 : i32, i32
  }
  func.func @transform_2(%arg0: i32) -> (i32, i32) {
    %c0_i32 = arith.constant 0 : i32
    %c0_i32_0 = arith.constant 0 : i32
    %c0_i32_1 = arith.constant 0 : i32
    return %c0_i32, %c0_i32_0 : i32, i32
  }
  func.func @transform_3(%arg0: i32) -> (i32, i32) {
    %c0_i32 = arith.constant 0 : i32
    %c0_i32_0 = arith.constant 0 : i32
    return %arg0, %c0_i32 : i32, i32
  }
}

</mosaic_0001>

<llo_original>
// kernel: tpu_custom_call.1
$region0: #{tpu_custom_call.1}
  #allocation0 [shape = 'u32[]', space=smem, size = 0x4, offset = 0x4, fixed_abs, tag = 'smem constant byte address 0x4 - core index']
  #allocation1 [shape = 'u32[72,128]{1,0:T(1,128)}', space=vmem, size = 0x9000, scoped, tag = 'internal scratch']
  %s0 = inlined_call_operand.vmem [shape: s32[8,3], index: 0, kind: input, shape index: {}]
  %s1 = inlined_call_operand.vmem [shape: f32[8,7], index: 1, kind: input, shape index: {}]
  %s2 = inlined_call_operand.hbm [shape: f32[128,128], index: 2, kind: input, shape index: {}]
  %s3 = inlined_call_operand.hbm [shape: f32[8,37], index: 3, kind: output, shape index: {}]
  %s4 = sld [smem:[#allocation0]]
  $region26: #{tpu_custom_call.1} parent=0
    _
  %s6 = ssub.s32 1, %s4
  %s7 = scalar_select 0, %s6, %s4
  $region1: #{tpu_custom_call.1} parent=0
    #allocation2 [shape = 'u8[65536]{0}', space=vmem, size = 0x10000, scoped, tag = 'input window, operand 2, single buffered']
    #allocation3 [shape = 's32[1]{0}', space=sflag, size = 0x4, scoped, tag = 'scoped memory for tpu_custom_call.1']
    #allocation4 [shape = 's32[1]{0}', space=sflag, size = 0x4, scoped, tag = 'scoped memory for tpu_custom_call.1']
    #allocation5 [shape = 'u8[4096]{0}', space=vmem, size = 0x1000, scoped, tag = 'output window, operand 0, single buffered']
    %8 = vsyncpa [#allocation3], 0
    %9 = vsyncpa [#allocation4], 0
    // Predicated region
    $region2: #{tpu_custom_call.1} parent=1 // pred_check
      _
    $region3: #{tpu_custom_call.1} parent=1 // pred_check_branch
      %11 = sbr.rel (0) target = $region5
    $region4: #{tpu_custom_call.1} parent=1 // pred_region
      _
    $region5: #{tpu_custom_call.1} parent=1 // pred_fallthru
      _
    // Predicated region
    $region6: #{tpu_custom_call.1} parent=1 // pred_check
      _
    $region7: #{tpu_custom_call.1} parent=1 // pred_check_branch
      %13 = sbr.rel (0) target = $region9
    $region8: #{tpu_custom_call.1} parent=1 // pred_region
      _
    $region9: #{tpu_custom_call.1} parent=1 // pred_fallthru
      _
    // Predicated region
    $region10: #{tpu_custom_call.1} parent=1 // pred_check
      _
    $region11: #{tpu_custom_call.1} parent=1 // pred_check_branch
      %15 = sbr.rel (0) target = $region13
    $region12: #{tpu_custom_call.1} parent=1 // pred_region
      %17 = vsyncadd [#allocation3], 0
      %s18 = sshll.u32 %s2, 4
      %s19 = int_to_ptr.hbm [resolvable:$true] %s18
      %s20 = sshll.u32 [#allocation2], 4
      %s21 = int_to_ptr.vmem [resolvable:$true] %s20
      %26 = dma.hbm_to_vmem [thread:$0]  %s19, 2048, %s21, [#allocation3], 128, 128, 8
    $region13: #{tpu_custom_call.1} parent=1 // pred_fallthru
      _
    // Predicated region
    $region14: #{tpu_custom_call.1} parent=1 // pred_check
      _
    $region15: #{tpu_custom_call.1} parent=1 // pred_check_branch
      %28 = sbr.rel (0) target = $region17
    $region16: #{tpu_custom_call.1} parent=1 // pred_region
      %30 = dma.done [#allocation3], 2048
    $region17: #{tpu_custom_call.1} parent=1 // pred_fallthru
      _
    %v31 = vld [vmem:[%s0] sm:$0xff]
    %v32 = vld [vmem:[%s1] sm:$0xff]
    %v33 = vlaneseq
    %v34 = vand.u32 %v33, 127
    %v35 = vadd.s32 %v31, 7
    %36 = vset.pattern.permute.xlu0 0
    %37 = vperm.xlu0 %36, %v35
    %v38 = vpop.permute.xlu0 %37
    %vm39 = vcmp.eq.s32.totalorder %v34, %v38
    %v40 = vadd.s32 %v31, 13
    %41 = vset.pattern.permute.xlu0 1
    %42 = vperm.xlu0 %41, %v40
    %v43 = vpop.permute.xlu0 %42
    %vm44 = vcmp.eq.s32.totalorder %v34, %v43
    %vm45 = vmor %vm39, %vm44
    %v46 = vadd.s32 %v31, 17
    %47 = vset.pattern.permute.xlu0 2
    %48 = vperm.xlu0 %47, %v46
    %v49 = vpop.permute.xlu0 %48
    %vm50 = vcmp.eq.s32.totalorder %v34, %v49
    %vm51 = vmor %vm45, %vm50
    %vm52 = vcmask 56320
    %v53 = vsel %vm52, %v32, 0.0
    %v54 = vsel %vm51, 1.0, %v53
    %v55 = vld [vmem:[#allocation2] sm:$0xff]
    %v56 = vld [vmem:[#allocation2 + $0x8] sm:$0xff]
    %v57 = vld [vmem:[#allocation2 + $0x10] sm:$0xff]
    %v58 = vld [vmem:[#allocation2 + $0x18] sm:$0xff]
    %v59 = vld [vmem:[#allocation2 + $0x20] sm:$0xff]
    %v60 = vld [vmem:[#allocation2 + $0x28] sm:$0xff]
    %v61 = vld [vmem:[#allocation2 + $0x30] sm:$0xff]
    %v62 = vld [vmem:[#allocation2 + $0x38] sm:$0xff]
    %v63 = vld [vmem:[#allocation2 + $0x40] sm:$0xff]
    %v64 = vld [vmem:[#allocation2 + $0x48] sm:$0xff]
    %v65 = vld [vmem:[#allocation2 + $0x50] sm:$0xff]
    %v66 = vld [vmem:[#allocation2 + $0x58] sm:$0xff]
    %v67 = vld [vmem:[#allocation2 + $0x60] sm:$0xff]
    %v68 = vld [vmem:[#allocation2 + $0x68] sm:$0xff]
    %v69 = vld [vmem:[#allocation2 + $0x70] sm:$0xff]
    %v70 = vld [vmem:[#allocation2 + $0x78] sm:$0xff]
    %71 = vmatpush.msra.mxu0 %v70
    %72 = vmatpush.msra.mxu0 %v69
    %73 = vmatpush.msra.mxu0 %v68
    %74 = vmatpush.msra.mxu0 %v67
    %75 = vmatpush.msra.mxu0 %v66
    %76 = vmatpush.msra.mxu0 %v65
    %77 = vmatpush.msra.mxu0 %v64
    %78 = vmatpush.msra.mxu0 %v63
    %79 = vmatpush.msra.mxu0 %v62
    %80 = vmatpush.msra.mxu0 %v61
    %81 = vmatpush.msra.mxu0 %v60
    %82 = vmatpush.msra.mxu0 %v59
    %83 = vmatpush.msra.mxu0 %v58
    %84 = vmatpush.msra.mxu0 %v57
    %85 = vmatpush.msra.mxu0 %v56
    %86 = vmatpush.msra.mxu0 %v55
    %87 = vmatmul.f32.gmra.mxu0 %v54
    %v88 = vpop.f32.mrf.mxu0
    %v89 = vadd.f32 0.0, %v88
    %90 = vdwg.mxu0
    %vm91 = vcmask 302080
    %92 = vst.msk [vmem:[#allocation5] sm:$0xff] %vm91, %v89
    // Predicated region
    $region18: #{tpu_custom_call.1} parent=1 // pred_check
      _
    $region19: #{tpu_custom_call.1} parent=1 // pred_check_branch
      %94 = sbr.rel (0) target = $region21
    $region20: #{tpu_custom_call.1} parent=1 // pred_region
      %96 = vsyncadd [#allocation4], 0
      %s98 = sshll.u32 [#allocation5], 4
      %s99 = int_to_ptr.vmem [resolvable:$true] %s98
      %s100 = sshll.u32 %s3, 4
      %s101 = int_to_ptr.hbm [resolvable:$true] %s100
      %103 = dma.vmem_to_hbm [thread:$0]  %s99, 128, %s101, [#allocation4]
    $region21: #{tpu_custom_call.1} parent=1 // pred_fallthru
      _
    // Predicated region
    $region22: #{tpu_custom_call.1} parent=1 // pred_check
      _
    $region23: #{tpu_custom_call.1} parent=1 // pred_check_branch
      %105 = sbr.rel (0) target = $region25
    $region24: #{tpu_custom_call.1} parent=1 // pred_region
      %107 = dma.done [#allocation4], 128
    $region25: #{tpu_custom_call.1} parent=1 // pred_fallthru
      _
    %108 = vsyncpa [#allocation3], 1
    %109 = vsyncpa [#allocation4], 1

</llo_original>
